<compile_context>
chip_gen: v7x
topology: tpu7x:2x2x1
jax: 0.10.0
libtpu: 0.0.40
codegen_flags: <defaults>
</compile_context>

<pallas_src>
import numpy as np

import jax
import jax.numpy as jnp
from jax import lax
from jax.experimental import pallas as pl
from jax.experimental.pallas import tpu as pltpu

C_IN = 3
C_OUT = 3
KH = 3
KW = 1
STRIDE_H = 300
STRIDE_W = 1
PAD_H = 1
PAD_W = 0

CK = C_IN * KH                 # 9 contraction taps (ci-major, kh-minor)
LANE = 128
R_CHUNK = 16                   # sublane rows per inner compute chunk (2048 lanes)
LANE_GRANULE = R_CHUNK * LANE  # lane-tile granularity
MAX_L_TILE = 128 * 1024        # lanes per grid step (multiple of LANE_GRANULE)


def _round_up(a: int, b: int) -> int:
    return -(-a // b) * b


def _downsample_kernel(xg_ref, w_ref, b_ref, o_ref):
    """VPU conv kernel.

    xg_ref: (CK, R_TILE, 128) VMEM  gathered taps, lane-dense planes
    w_ref : (C_OUT*CK,)       SMEM  flattened conv weights (co, ci, kh)
    b_ref : (C_OUT,)          SMEM  bias
    o_ref : (C_OUT, R_TILE, 128) VMEM
    """
    r_tile = o_ref.shape[1]
    n_chunks = r_tile // R_CHUNK   # static; L_tile is a multiple of R_CHUNK*128

    # Hoist the 27 weight scalars + 3 biases out of the chunk loop.
    w = [[w_ref[co * CK + k] for k in range(CK)] for co in range(C_OUT)]
    b = [b_ref[co] for co in range(C_OUT)]

    def chunk_body(c, carry):
        r0 = pl.multiple_of(c * R_CHUNK, R_CHUNK)
        # 9 tap planes of (R_CHUNK, 128) -> ~20 live vregs, stays in registers.
        taps = [xg_ref[k, pl.ds(r0, R_CHUNK), :] for k in range(CK)]
        for co in range(C_OUT):
            acc = taps[0] * w[co][0]
            for k in range(1, CK):
                acc = acc + taps[k] * w[co][k]
            o_ref[co, pl.ds(r0, R_CHUNK), :] = (acc + b[co]).astype(o_ref.dtype)
        return carry

    lax.fori_loop(0, n_chunks, chunk_body, 0)


@jax.jit
def downsample_forward(x, weight, bias):
    """x: (N, 3, H, W); weight: (3, 3, 3, 1); bias: (3,).

    Returns (N, 3, OH, OW) matching nn.Conv2d(3, 3, (3,1), stride=(300,1),
    padding=(1,0)).
    """
    N, C, H, W = x.shape
    assert C == C_IN
    OH = (H + 2 * PAD_H - KH) // STRIDE_H + 1
    OW = (W + 2 * PAD_W - KW) // STRIDE_W + 1   # == W (kw=1, sw=1, pw=0)

    # ---- tap gather: host-constant (KH, OH) row indices -> NO transpose ----
    oh = np.arange(OH)
    kh = np.arange(KH)
    row_idx = kh[:, None] + oh[None, :] * STRIDE_H - PAD_H          # (KH, OH)
    valid = ((row_idx >= 0) & (row_idx < H)).astype(np.float32)     # (KH, OH)
    row_c = np.clip(row_idx, 0, H - 1)

    # Row gather (W stays a contiguous slice dim), boundary taps zeroed,
    # then a FREE reshape to (N, CK, L) with L = OH*W on the lane axis.
    patches = x[:, :, row_c, :] * jnp.asarray(valid, x.dtype)[None, None, :, :, None]
    L = OH * OW
    xg = patches.reshape(N, CK, L)

    # ---- lane tiling: big tiles; >= 2 grid steps when N == 1 (v7x megacore) ----
    n_l = max(1, -(-L // MAX_L_TILE))
    if N * n_l < 2 and L > LANE_GRANULE:
        n_l = 2
    L_tile = _round_up(-(-L // n_l), LANE_GRANULE)
    Lp = n_l * L_tile
    if Lp > L:
        # < one tile of zero columns; fuses into the gather/mask producer.
        xg = jnp.pad(xg, ((0, 0), (0, 0), (0, Lp - L)))
    xg = xg.reshape(N, CK, Lp // LANE, LANE)
    R_TILE = L_tile // LANE
    assert R_TILE % R_CHUNK == 0

    w_flat = weight.reshape(C_OUT * CK * KW).astype(x.dtype)   # (27,) co,ci,kh
    b_flat = bias.reshape(C_OUT).astype(x.dtype)               # (3,)

    # Double-buffered in+out blocks (no sublane padding in this plane layout).
    itemsize = jnp.dtype(x.dtype).itemsize
    vmem_bytes = 2 * (CK + C_OUT) * L_tile * itemsize + (8 << 20)
    vmem_limit = int(min(max(vmem_bytes, 16 << 20), 48 << 20))

    out4 = pl.pallas_call(
        _downsample_kernel,
        out_shape=jax.ShapeDtypeStruct((N, C_OUT, Lp // LANE, LANE), x.dtype),
        grid_spec=pltpu.PrefetchScalarGridSpec(
            num_scalar_prefetch=0,
            grid=(N, n_l),
            in_specs=[
                pl.BlockSpec((None, CK, R_TILE, LANE), lambda n, l: (n, 0, l, 0)),
                pl.BlockSpec(memory_space=pltpu.MemorySpace.SMEM),   # weights
                pl.BlockSpec(memory_space=pltpu.MemorySpace.SMEM),   # bias
            ],
            out_specs=pl.BlockSpec((None, C_OUT, R_TILE, LANE),
                                   lambda n, l: (n, 0, l, 0)),
        ),
        compiler_params=pltpu.CompilerParams(
            dimension_semantics=("parallel", "parallel"),
            vmem_limit_bytes=vmem_limit,
        ),
    )(xg, w_flat, b_flat)

    # (N, C_OUT, Lp) -> (N, C_OUT, OH, OW): straight NCHW, no transpose.
    out = out4.reshape(N, C_OUT, Lp)[:, :, :L]
    return out.reshape(N, C_OUT, OH, OW)


def _reference_conv(x, weight, bias):
    # Pure-JAX reference (XLA conv) for sanity checking.
    out = lax.conv_general_dilated(
        x, weight,
        window_strides=(STRIDE_H, STRIDE_W),
        padding=((PAD_H, PAD_H), (PAD_W, PAD_W)),
        dimension_numbers=("NCHW", "OIHW", "NCHW"),
    )
    return out + bias.reshape(1, C_OUT, 1, 1)


if __name__ == "__main__":
    key = jax.random.PRNGKey(0)
    kx, kw, kb, kx2, kx3 = jax.random.split(key, 5)

    # Deterministic synthetic parameters (PyTorch-style uniform init bounds).
    fan_in = C_IN * KH * KW
    bound = 1.0 / (fan_in ** 0.5)
    weight = jax.random.uniform(kw, (C_OUT, C_IN, KH, KW), jnp.float32,
                                minval=-bound, maxval=bound)
    bias = jax.random.uniform(kb, (C_OUT,), jnp.float32,
                              minval=-bound, maxval=bound)

    # Small NCHW input consistent with the module (channels must be 3).
    x = jax.random.normal(kx, (2, 3, 16, 16), jnp.float32)
    y = jax.block_until_ready(downsample_forward(x, weight, bias))
    y_ref = _reference_conv(x, weight, bias)
    assert y.shape == y_ref.shape == (2, 3, 1, 16), y.shape
    assert jnp.allclose(y, y_ref, atol=1e-5, rtol=1e-5)

    # OH > 1 (top/bottom pad rows masked), W not a multiple of 128.
    x2 = jax.random.normal(kx2, (1, 3, 601, 144), jnp.float32)
    y2 = jax.block_until_ready(downsample_forward(x2, weight, bias))
    y2_ref = _reference_conv(x2, weight, bias)
    assert y2.shape == y2_ref.shape == (1, 3, 3, 144), y2.shape
    assert jnp.allclose(y2, y2_ref, atol=1e-5, rtol=1e-5)

    # N == 1 with L > one granule: exercises the 2-tile lane split + lane pad.
    x3 = jax.random.normal(kx3, (1, 3, 601, 768), jnp.float32)
    y3 = jax.block_until_ready(downsample_forward(x3, weight, bias))
    y3_ref = _reference_conv(x3, weight, bias)
    assert y3.shape == y3_ref.shape == (1, 3, 3, 768), y3.shape
    assert jnp.allclose(y3, y3_ref, atol=1e-5, rtol=1e-5)

    print("KERNEL_OK")
</pallas_src>

<mosaic_0001>
module attributes {stable_mosaic.version = 11 : i64} {
  func.func @_downsample_kernel(%arg0: i32, %arg1: i32, %arg2: memref<1x9x16x128xf32, #tpu.memory_space<vmem>>, %arg3: memref<27xf32, #tpu.memory_space<smem>>, %arg4: memref<3xf32, #tpu.memory_space<smem>>, %arg5: memref<1x3x16x128xf32, #tpu.memory_space<vmem>>) attributes {dimension_semantics = [#tpu.dimension_semantics<parallel>, #tpu.dimension_semantics<parallel>], iteration_bounds = array<i64: 2, 1>, scalar_prefetch = 0 : i64, scratch_operands = 0 : i64, tpu.core_type = #tpu.core_type<tc>, window_params = [{transform_indices = @transform_0, window_bounds = array<i64: 1, 9, 16, 128>}, {transform_indices = @transform_1, window_bounds = array<i64: 27>}, {transform_indices = @transform_2, window_bounds = array<i64: 3>}, {transform_indices = @transform_3, window_bounds = array<i64: 1, 3, 16, 128>}]} {
    %c0 = arith.constant 0 : index
    %0 = memref.load %arg3[%c0] : memref<27xf32, #tpu.memory_space<smem>>
    %c1 = arith.constant 1 : index
    %1 = memref.load %arg3[%c1] : memref<27xf32, #tpu.memory_space<smem>>
    %c2 = arith.constant 2 : index
    %2 = memref.load %arg3[%c2] : memref<27xf32, #tpu.memory_space<smem>>
    %c3 = arith.constant 3 : index
    %3 = memref.load %arg3[%c3] : memref<27xf32, #tpu.memory_space<smem>>
    %c4 = arith.constant 4 : index
    %4 = memref.load %arg3[%c4] : memref<27xf32, #tpu.memory_space<smem>>
    %c5 = arith.constant 5 : index
    %5 = memref.load %arg3[%c5] : memref<27xf32, #tpu.memory_space<smem>>
    %c6 = arith.constant 6 : index
    %6 = memref.load %arg3[%c6] : memref<27xf32, #tpu.memory_space<smem>>
    %c7 = arith.constant 7 : index
    %7 = memref.load %arg3[%c7] : memref<27xf32, #tpu.memory_space<smem>>
    %c8 = arith.constant 8 : index
    %8 = memref.load %arg3[%c8] : memref<27xf32, #tpu.memory_space<smem>>
    %c9 = arith.constant 9 : index
    %9 = memref.load %arg3[%c9] : memref<27xf32, #tpu.memory_space<smem>>
    %c10 = arith.constant 10 : index
    %10 = memref.load %arg3[%c10] : memref<27xf32, #tpu.memory_space<smem>>
    %c11 = arith.constant 11 : index
    %11 = memref.load %arg3[%c11] : memref<27xf32, #tpu.memory_space<smem>>
    %c12 = arith.constant 12 : index
    %12 = memref.load %arg3[%c12] : memref<27xf32, #tpu.memory_space<smem>>
    %c13 = arith.constant 13 : index
    %13 = memref.load %arg3[%c13] : memref<27xf32, #tpu.memory_space<smem>>
    %c14 = arith.constant 14 : index
    %14 = memref.load %arg3[%c14] : memref<27xf32, #tpu.memory_space<smem>>
    %c15 = arith.constant 15 : index
    %15 = memref.load %arg3[%c15] : memref<27xf32, #tpu.memory_space<smem>>
    %c16 = arith.constant 16 : index
    %16 = memref.load %arg3[%c16] : memref<27xf32, #tpu.memory_space<smem>>
    %c17 = arith.constant 17 : index
    %17 = memref.load %arg3[%c17] : memref<27xf32, #tpu.memory_space<smem>>
    %c18 = arith.constant 18 : index
    %18 = memref.load %arg3[%c18] : memref<27xf32, #tpu.memory_space<smem>>
    %c19 = arith.constant 19 : index
    %19 = memref.load %arg3[%c19] : memref<27xf32, #tpu.memory_space<smem>>
    %c20 = arith.constant 20 : index
    %20 = memref.load %arg3[%c20] : memref<27xf32, #tpu.memory_space<smem>>
    %c21 = arith.constant 21 : index
    %21 = memref.load %arg3[%c21] : memref<27xf32, #tpu.memory_space<smem>>
    %c22 = arith.constant 22 : index
    %22 = memref.load %arg3[%c22] : memref<27xf32, #tpu.memory_space<smem>>
    %c23 = arith.constant 23 : index
    %23 = memref.load %arg3[%c23] : memref<27xf32, #tpu.memory_space<smem>>
    %c24 = arith.constant 24 : index
    %24 = memref.load %arg3[%c24] : memref<27xf32, #tpu.memory_space<smem>>
    %c25 = arith.constant 25 : index
    %25 = memref.load %arg3[%c25] : memref<27xf32, #tpu.memory_space<smem>>
    %c26 = arith.constant 26 : index
    %26 = memref.load %arg3[%c26] : memref<27xf32, #tpu.memory_space<smem>>
    %c0_0 = arith.constant 0 : index
    %27 = memref.load %arg4[%c0_0] : memref<3xf32, #tpu.memory_space<smem>>
    %c1_1 = arith.constant 1 : index
    %28 = memref.load %arg4[%c1_1] : memref<3xf32, #tpu.memory_space<smem>>
    %c2_2 = arith.constant 2 : index
    %29 = memref.load %arg4[%c2_2] : memref<3xf32, #tpu.memory_space<smem>>
    %c0_i32 = arith.constant 0 : i32
    %c16_i32 = arith.constant 16 : i32
    %30 = arith.muli %c0_i32, %c16_i32 : i32
    %31 = tpu.assume_multiple %30, 16 : i32
    %c0_3 = arith.constant 0 : index
    %c0_4 = arith.constant 0 : index
    %32 = arith.index_cast %31 : i32 to index
    %c0_5 = arith.constant 0 : index
    %33 = vector.load %arg2[%c0_3, %c0_4, %32, %c0_5] : memref<1x9x16x128xf32, #tpu.memory_space<vmem>>, vector<1x1x16x128xf32>
    %34 = vector.shape_cast %33 : vector<1x1x16x128xf32> to vector<16x128xf32>
    %c0_6 = arith.constant 0 : index
    %c1_7 = arith.constant 1 : index
    %35 = arith.index_cast %31 : i32 to index
    %c0_8 = arith.constant 0 : index
    %36 = vector.load %arg2[%c0_6, %c1_7, %35, %c0_8] : memref<1x9x16x128xf32, #tpu.memory_space<vmem>>, vector<1x1x16x128xf32>
    %37 = vector.shape_cast %36 : vector<1x1x16x128xf32> to vector<16x128xf32>
    %c0_9 = arith.constant 0 : index
    %c2_10 = arith.constant 2 : index
    %38 = arith.index_cast %31 : i32 to index
    %c0_11 = arith.constant 0 : index
    %39 = vector.load %arg2[%c0_9, %c2_10, %38, %c0_11] : memref<1x9x16x128xf32, #tpu.memory_space<vmem>>, vector<1x1x16x128xf32>
    %40 = vector.shape_cast %39 : vector<1x1x16x128xf32> to vector<16x128xf32>
    %c0_12 = arith.constant 0 : index
    %c3_13 = arith.constant 3 : index
    %41 = arith.index_cast %31 : i32 to index
    %c0_14 = arith.constant 0 : index
    %42 = vector.load %arg2[%c0_12, %c3_13, %41, %c0_14] : memref<1x9x16x128xf32, #tpu.memory_space<vmem>>, vector<1x1x16x128xf32>
    %43 = vector.shape_cast %42 : vector<1x1x16x128xf32> to vector<16x128xf32>
    %c0_15 = arith.constant 0 : index
    %c4_16 = arith.constant 4 : index
    %44 = arith.index_cast %31 : i32 to index
    %c0_17 = arith.constant 0 : index
    %45 = vector.load %arg2[%c0_15, %c4_16, %44, %c0_17] : memref<1x9x16x128xf32, #tpu.memory_space<vmem>>, vector<1x1x16x128xf32>
    %46 = vector.shape_cast %45 : vector<1x1x16x128xf32> to vector<16x128xf32>
    %c0_18 = arith.constant 0 : index
    %c5_19 = arith.constant 5 : index
    %47 = arith.index_cast %31 : i32 to index
    %c0_20 = arith.constant 0 : index
    %48 = vector.load %arg2[%c0_18, %c5_19, %47, %c0_20] : memref<1x9x16x128xf32, #tpu.memory_space<vmem>>, vector<1x1x16x128xf32>
    %49 = vector.shape_cast %48 : vector<1x1x16x128xf32> to vector<16x128xf32>
    %c0_21 = arith.constant 0 : index
    %c6_22 = arith.constant 6 : index
    %50 = arith.index_cast %31 : i32 to index
    %c0_23 = arith.constant 0 : index
    %51 = vector.load %arg2[%c0_21, %c6_22, %50, %c0_23] : memref<1x9x16x128xf32, #tpu.memory_space<vmem>>, vector<1x1x16x128xf32>
    %52 = vector.shape_cast %51 : vector<1x1x16x128xf32> to vector<16x128xf32>
    %c0_24 = arith.constant 0 : index
    %c7_25 = arith.constant 7 : index
    %53 = arith.index_cast %31 : i32 to index
    %c0_26 = arith.constant 0 : index
    %54 = vector.load %arg2[%c0_24, %c7_25, %53, %c0_26] : memref<1x9x16x128xf32, #tpu.memory_space<vmem>>, vector<1x1x16x128xf32>
    %55 = vector.shape_cast %54 : vector<1x1x16x128xf32> to vector<16x128xf32>
    %c0_27 = arith.constant 0 : index
    %c8_28 = arith.constant 8 : index
    %56 = arith.index_cast %31 : i32 to index
    %c0_29 = arith.constant 0 : index
    %57 = vector.load %arg2[%c0_27, %c8_28, %56, %c0_29] : memref<1x9x16x128xf32, #tpu.memory_space<vmem>>, vector<1x1x16x128xf32>
    %58 = vector.shape_cast %57 : vector<1x1x16x128xf32> to vector<16x128xf32>
    %59 = vector.broadcast %0 : f32 to vector<16x128xf32>
    %60 = arith.mulf %34, %59 : vector<16x128xf32>
    %61 = vector.broadcast %1 : f32 to vector<16x128xf32>
    %62 = arith.mulf %37, %61 : vector<16x128xf32>
    %63 = arith.addf %60, %62 : vector<16x128xf32>
    %64 = vector.broadcast %2 : f32 to vector<16x128xf32>
    %65 = arith.mulf %40, %64 : vector<16x128xf32>
    %66 = arith.addf %63, %65 : vector<16x128xf32>
    %67 = vector.broadcast %3 : f32 to vector<16x128xf32>
    %68 = arith.mulf %43, %67 : vector<16x128xf32>
    %69 = arith.addf %66, %68 : vector<16x128xf32>
    %70 = vector.broadcast %4 : f32 to vector<16x128xf32>
    %71 = arith.mulf %46, %70 : vector<16x128xf32>
    %72 = arith.addf %69, %71 : vector<16x128xf32>
    %73 = vector.broadcast %5 : f32 to vector<16x128xf32>
    %74 = arith.mulf %49, %73 : vector<16x128xf32>
    %75 = arith.addf %72, %74 : vector<16x128xf32>
    %76 = vector.broadcast %6 : f32 to vector<16x128xf32>
    %77 = arith.mulf %52, %76 : vector<16x128xf32>
    %78 = arith.addf %75, %77 : vector<16x128xf32>
    %79 = vector.broadcast %7 : f32 to vector<16x128xf32>
    %80 = arith.mulf %55, %79 : vector<16x128xf32>
    %81 = arith.addf %78, %80 : vector<16x128xf32>
    %82 = vector.broadcast %8 : f32 to vector<16x128xf32>
    %83 = arith.mulf %58, %82 : vector<16x128xf32>
    %84 = arith.addf %81, %83 : vector<16x128xf32>
    %85 = vector.broadcast %27 : f32 to vector<16x128xf32>
    %86 = arith.addf %84, %85 : vector<16x128xf32>
    %c0_30 = arith.constant 0 : index
    %c0_31 = arith.constant 0 : index
    %87 = arith.index_cast %31 : i32 to index
    %c0_32 = arith.constant 0 : index
    %88 = vector.load %arg5[%c0_30, %c0_31, %87, %c0_32] : memref<1x3x16x128xf32, #tpu.memory_space<vmem>>, vector<1x1x16x128xf32>
    %89 = vector.shape_cast %88 : vector<1x1x16x128xf32> to vector<16x128xf32>
    %90 = vector.shape_cast %86 : vector<16x128xf32> to vector<1x1x16x128xf32>
    tpu.vector_store %arg5[%c0_30, %c0_31, %87, %c0_32], %90 {strides = array<i32>} : memref<1x3x16x128xf32, #tpu.memory_space<vmem>>, vector<1x1x16x128xf32>,
    %91 = vector.broadcast %9 : f32 to vector<16x128xf32>
    %92 = arith.mulf %34, %91 : vector<16x128xf32>
    %93 = vector.broadcast %10 : f32 to vector<16x128xf32>
    %94 = arith.mulf %37, %93 : vector<16x128xf32>
    %95 = arith.addf %92, %94 : vector<16x128xf32>
    %96 = vector.broadcast %11 : f32 to vector<16x128xf32>
    %97 = arith.mulf %40, %96 : vector<16x128xf32>
    %98 = arith.addf %95, %97 : vector<16x128xf32>
    %99 = vector.broadcast %12 : f32 to vector<16x128xf32>
    %100 = arith.mulf %43, %99 : vector<16x128xf32>
    %101 = arith.addf %98, %100 : vector<16x128xf32>
    %102 = vector.broadcast %13 : f32 to vector<16x128xf32>
    %103 = arith.mulf %46, %102 : vector<16x128xf32>
    %104 = arith.addf %101, %103 : vector<16x128xf32>
    %105 = vector.broadcast %14 : f32 to vector<16x128xf32>
    %106 = arith.mulf %49, %105 : vector<16x128xf32>
    %107 = arith.addf %104, %106 : vector<16x128xf32>
    %108 = vector.broadcast %15 : f32 to vector<16x128xf32>
    %109 = arith.mulf %52, %108 : vector<16x128xf32>
    %110 = arith.addf %107, %109 : vector<16x128xf32>
    %111 = vector.broadcast %16 : f32 to vector<16x128xf32>
    %112 = arith.mulf %55, %111 : vector<16x128xf32>
    %113 = arith.addf %110, %112 : vector<16x128xf32>
    %114 = vector.broadcast %17 : f32 to vector<16x128xf32>
    %115 = arith.mulf %58, %114 : vector<16x128xf32>
    %116 = arith.addf %113, %115 : vector<16x128xf32>
    %117 = vector.broadcast %28 : f32 to vector<16x128xf32>
    %118 = arith.addf %116, %117 : vector<16x128xf32>
    %c0_33 = arith.constant 0 : index
    %c1_34 = arith.constant 1 : index
    %119 = arith.index_cast %31 : i32 to index
    %c0_35 = arith.constant 0 : index
    %120 = vector.load %arg5[%c0_33, %c1_34, %119, %c0_35] : memref<1x3x16x128xf32, #tpu.memory_space<vmem>>, vector<1x1x16x128xf32>
    %121 = vector.shape_cast %120 : vector<1x1x16x128xf32> to vector<16x128xf32>
    %122 = vector.shape_cast %118 : vector<16x128xf32> to vector<1x1x16x128xf32>
    tpu.vector_store %arg5[%c0_33, %c1_34, %119, %c0_35], %122 {strides = array<i32>} : memref<1x3x16x128xf32, #tpu.memory_space<vmem>>, vector<1x1x16x128xf32>,
    %123 = vector.broadcast %18 : f32 to vector<16x128xf32>
    %124 = arith.mulf %34, %123 : vector<16x128xf32>
    %125 = vector.broadcast %19 : f32 to vector<16x128xf32>
    %126 = arith.mulf %37, %125 : vector<16x128xf32>
    %127 = arith.addf %124, %126 : vector<16x128xf32>
    %128 = vector.broadcast %20 : f32 to vector<16x128xf32>
    %129 = arith.mulf %40, %128 : vector<16x128xf32>
    %130 = arith.addf %127, %129 : vector<16x128xf32>
    %131 = vector.broadcast %21 : f32 to vector<16x128xf32>
    %132 = arith.mulf %43, %131 : vector<16x128xf32>
    %133 = arith.addf %130, %132 : vector<16x128xf32>
    %134 = vector.broadcast %22 : f32 to vector<16x128xf32>
    %135 = arith.mulf %46, %134 : vector<16x128xf32>
    %136 = arith.addf %133, %135 : vector<16x128xf32>
    %137 = vector.broadcast %23 : f32 to vector<16x128xf32>
    %138 = arith.mulf %49, %137 : vector<16x128xf32>
    %139 = arith.addf %136, %138 : vector<16x128xf32>
    %140 = vector.broadcast %24 : f32 to vector<16x128xf32>
    %141 = arith.mulf %52, %140 : vector<16x128xf32>
    %142 = arith.addf %139, %141 : vector<16x128xf32>
    %143 = vector.broadcast %25 : f32 to vector<16x128xf32>
    %144 = arith.mulf %55, %143 : vector<16x128xf32>
    %145 = arith.addf %142, %144 : vector<16x128xf32>
    %146 = vector.broadcast %26 : f32 to vector<16x128xf32>
    %147 = arith.mulf %58, %146 : vector<16x128xf32>
    %148 = arith.addf %145, %147 : vector<16x128xf32>
    %149 = vector.broadcast %29 : f32 to vector<16x128xf32>
    %150 = arith.addf %148, %149 : vector<16x128xf32>
    %c0_36 = arith.constant 0 : index
    %c2_37 = arith.constant 2 : index
    %151 = arith.index_cast %31 : i32 to index
    %c0_38 = arith.constant 0 : index
    %152 = vector.load %arg5[%c0_36, %c2_37, %151, %c0_38] : memref<1x3x16x128xf32, #tpu.memory_space<vmem>>, vector<1x1x16x128xf32>
    %153 = vector.shape_cast %152 : vector<1x1x16x128xf32> to vector<16x128xf32>
    %154 = vector.shape_cast %150 : vector<16x128xf32> to vector<1x1x16x128xf32>
    tpu.vector_store %arg5[%c0_36, %c2_37, %151, %c0_38], %154 {strides = array<i32>} : memref<1x3x16x128xf32, #tpu.memory_space<vmem>>, vector<1x1x16x128xf32>,
    %c1_i32 = arith.constant 1 : i32
    return
  }
  func.func @transform_0(%arg0: i32, %arg1: i32) -> (i32, i32, i32, i32) {
    %c0_i32 = arith.constant 0 : i32
    %c0_i32_0 = arith.constant 0 : i32
    %c0_i32_1 = arith.constant 0 : i32
    return %arg0, %c0_i32, %arg1, %c0_i32_0 : i32, i32, i32, i32
  }
  func.func @transform_1(%arg0: i32, %arg1: i32) -> i32 {
    %c0_i32 = arith.constant 0 : i32
    %c0_i32_0 = arith.constant 0 : i32
    return %c0_i32 : i32
  }
  func.func @transform_2(%arg0: i32, %arg1: i32) -> i32 {
    %c0_i32 = arith.constant 0 : i32
    %c0_i32_0 = arith.constant 0 : i32
    return %c0_i32 : i32
  }
  func.func @transform_3(%arg0: i32, %arg1: i32) -> (i32, i32, i32, i32) {
    %c0_i32 = arith.constant 0 : i32
    %c0_i32_0 = arith.constant 0 : i32
    %c0_i32_1 = arith.constant 0 : i32
    return %arg0, %c0_i32, %arg1, %c0_i32_0 : i32, i32, i32, i32
  }
}

</mosaic_0001>

<llo_original>
// kernel: downsample_forward.1
$region0: #{downsample_forward.1}
  #allocation0 [shape = 'u32[]', space=smem, size = 0x4, offset = 0x4, fixed_abs, tag = 'smem constant byte address 0x4 - core index']
  #allocation1 [shape = 'u32[144,128]{1,0:T(1,128)}', space=vmem, size = 0x12000, scoped, tag = 'internal scratch']
  %s0 = inlined_call_operand.vmem [shape: f32[2,9,16,128], index: 0, kind: input, shape index: {}]
  %s1 = inlined_call_operand.vmem [shape: f32[27], index: 1, kind: input, shape index: {}]
  %s2 = inlined_call_operand.vmem [shape: f32[3], index: 2, kind: input, shape index: {}]
  %s3 = inlined_call_operand.vmem [shape: f32[2,3,16,128], index: 3, kind: output, shape index: {}]
  %s4 = sld [smem:[#allocation0]]
  $region53: #{downsample_forward.1} parent=0
    _
  %s6 = ssub.s32 1, %s4
  %s7 = scalar_select 0, %s6, %s4
  $region1: #{downsample_forward.1} parent=0
    #allocation2 [shape = 'u8[512]{0}', space=smem, size = 0x200, scoped, tag = 'input window, operand 1, single buffered']
    #allocation3 [shape = 's32[2]{0}', space=sflag, size = 0x8, scoped, tag = 'scoped memory for downsample_forward.1']
    #allocation4 [shape = 'u8[512]{0}', space=smem, size = 0x200, scoped, tag = 'input window, operand 2, single buffered']
    #allocation5 [shape = 's32[1]{0}', space=sflag, size = 0x4, scoped, tag = 'scoped memory for downsample_forward.1']
    %8 = vsyncpa [#allocation3], 0
    %9 = vsyncpa [#allocation5], 0
    loop: start=0, step=1, limit=4
    $region2: #{downsample_forward.1} parent=1 // loop_pre_header
      _
    $region3: #{downsample_forward.1} parent=1 // loop_header
      %s11 = sphi 0, %s15
      %p12 = scmp.ge.s32.totalorder %s11, 4
      %s18 = sphi 0, %s30
      %s19 = sphi 0, %s26
      %s20 = sphi 0, %s18
      %s21 = sphi 0, %s19
      %s22 = sphi 0, %s20
      %s23 = sphi 0, %s21
      %s35 = sphi 0, %s37
      %s38 = sphi 0, %s35
      %s39 = sphi 0, %s38
      %s55 = sphi 0, %s39
      %s59 = sphi 0, %s59
      %s61 = sphi 0, %s59
      %s62 = sphi 0, %s61
      %s76 = sphi 0, %s62
      %s80 = sphi 0, %s80
      %s82 = sphi 0, %s80
      %s83 = sphi 0, %s82
      %s97 = sphi 0, %s83
      %s105 = sphi 0, %s107
      %s108 = sphi 0, %s105
      %s109 = sphi 0, %s108
      %s125 = sphi 0, %s109
    $region4: #{downsample_forward.1} parent=1 // loop_header_branch
      %14 = sbr.rel (%p12) target = $region8
    $region5: #{downsample_forward.1} parent=1 // loop_body
      %s16 = ssub.s32 %s11, 1
      %s17 = ssub.s32 %s11, 2
      %s24 = sadd.s32 1, %s19
      %p25 = scmp.ge.s32.totalorder %s24, 1
      %s26 = scalar_select %p25, 0, %s24
      %s27 = sadd.s32 1, %s18
      %s28 = scalar_select %p25, %s27, %s18
      %p29 = scmp.ge.s32.totalorder %s28, 2
      %s30 = scalar_select %p29, 0, %s28
      %s31 = ssub.s32 %s18, %s30
      %s32 = ssub.s32 %s19, %s26
      %s33 = sor.u32 %s31, %s32
      %p34 = scmp.eq.s32.totalorder %s33, 0
      %s36 = sadd.s32 %s35, 1
      %s37 = scalar_select %p34, %s35, %s36
      %p40 = pneg %p34
      %p41 = scmp.eq.s32.totalorder %s11, 1
      %p42 = por %p40, %p41
      %p43 = scmp.ne.s32.totalorder %s35, %s38
      %p44 = scmp.eq.s32.totalorder %s11, 0
      %p45 = por %p43, %p44
      %p46 = scmp.ne.s32.totalorder %s35, %s38
      %p47 = scmp.eq.s32.totalorder %s16, 1
      %p48 = por %p46, %p47
      %p49 = scmp.ne.s32.totalorder %s38, %s39
      %p50 = scmp.eq.s32.totalorder %s16, 0
      %p51 = por %p49, %p50
      %p52 = scmp.ne.s32.totalorder %s38, %s39
      %p53 = scmp.eq.s32.totalorder %s17, 1
      %p54 = por %p52, %p53
      %p56 = scmp.ne.s32.totalorder %s39, %s55
      %p57 = scmp.eq.s32.totalorder %s17, 0
      %p58 = por %p56, %p57
      %s60 = sadd.s32 %s59, 1
      %p63 = scmp.eq.s32.totalorder %s11, 1
      %p64 = scmp.ne.s32.totalorder %s59, %s61
      %p65 = scmp.eq.s32.totalorder %s11, 0
      %p66 = por %p64, %p65
      %p67 = scmp.ne.s32.totalorder %s59, %s61
      %p68 = scmp.eq.s32.totalorder %s16, 1
      %p69 = por %p67, %p68
      %p70 = scmp.ne.s32.totalorder %s61, %s62
      %p71 = scmp.eq.s32.totalorder %s16, 0
      %p72 = por %p70, %p71
      %p73 = scmp.ne.s32.totalorder %s61, %s62
      %p74 = scmp.eq.s32.totalorder %s17, 1
      %p75 = por %p73, %p74
      %p77 = scmp.ne.s32.totalorder %s62, %s76
      %p78 = scmp.eq.s32.totalorder %s17, 0
      %p79 = por %p77, %p78
      %s81 = sadd.s32 %s80, 1
      %p84 = scmp.eq.s32.totalorder %s11, 1
      %p85 = scmp.ne.s32.totalorder %s80, %s82
      %p86 = scmp.eq.s32.totalorder %s11, 0
      %p87 = por %p85, %p86
      %p88 = scmp.ne.s32.totalorder %s80, %s82
      %p89 = scmp.eq.s32.totalorder %s16, 1
      %p90 = por %p88, %p89
      %p91 = scmp.ne.s32.totalorder %s82, %s83
      %p92 = scmp.eq.s32.totalorder %s16, 0
      %p93 = por %p91, %p92
      %p94 = scmp.ne.s32.totalorder %s82, %s83
      %p95 = scmp.eq.s32.totalorder %s17, 1
      %p96 = por %p94, %p95
      %p98 = scmp.ne.s32.totalorder %s83, %s97
      %p99 = scmp.eq.s32.totalorder %s17, 0
      %p100 = por %p98, %p99
      %s101 = ssub.s32 %s18, %s30
      %s102 = ssub.s32 %s19, %s26
      %s103 = sor.u32 %s101, %s102
      %p104 = scmp.eq.s32.totalorder %s103, 0
      %s106 = sadd.s32 %s105, 1
      %s107 = scalar_select %p104, %s105, %s106
      %p110 = pneg %p104
      %p111 = scmp.eq.s32.totalorder %s11, 1
      %p112 = por %p110, %p111
      %p113 = scmp.ne.s32.totalorder %s105, %s108
      %p114 = scmp.eq.s32.totalorder %s11, 0
      %p115 = por %p113, %p114
      %p116 = scmp.ne.s32.totalorder %s105, %s108
      %p117 = scmp.eq.s32.totalorder %s16, 1
      %p118 = por %p116, %p117
      %p119 = scmp.ne.s32.totalorder %s108, %s109
      %p120 = scmp.eq.s32.totalorder %s16, 0
      %p121 = por %p119, %p120
      %p122 = scmp.ne.s32.totalorder %s108, %s109
      %p123 = scmp.eq.s32.totalorder %s17, 1
      %p124 = por %p122, %p123
      %p126 = scmp.ne.s32.totalorder %s109, %s125
      %p127 = scmp.eq.s32.totalorder %s17, 0
      %p128 = por %p126, %p127
      %p129 = scmp.le.s32.totalorder 1, %s11
      %p130 = scmp.lt.s32.totalorder %s11, 3
      %p131 = pnand %p129, %p130
      %p132 = pneg %p131
      // Predicated region
      $region9: #{downsample_forward.1} parent=5 // pred_check
        _
      $region10: #{downsample_forward.1} parent=5 // pred_check_branch
        %134 = sbr.rel (%p131) target = $region12
      $region11: #{downsample_forward.1} parent=5 // pred_region
        %s135 = ssub.s32 %s11, 1
        // Predicated region
        $region13: #{downsample_forward.1} parent=11 // pred_check
          %p136 = pneg %p72
        $region14: #{downsample_forward.1} parent=11 // pred_check_branch
          %138 = sbr.rel (%p136) target = $region16
        $region15: #{downsample_forward.1} parent=11 // pred_region
          %s140 = ssub.s32 16, 16
          %141 = vsyncadd [#allocation3], %s140
          %s143 = sshll.u32 %s1, 4
          %s144 = int_to_ptr.vmem [resolvable:$true] %s143
          %146 = dma.vmem_to_smem %s144, 16, [#allocation2], [#allocation3]
        $region16: #{downsample_forward.1} parent=11 // pred_fallthru
          _
        // Predicated region
        $region17: #{downsample_forward.1} parent=11 // pred_check
          %p147 = pneg %p93
        $region18: #{downsample_forward.1} parent=11 // pred_check_branch
          %149 = sbr.rel (%p147) target = $region20
        $region19: #{downsample_forward.1} parent=11 // pred_region
          %s151 = ssub.s32 16, 16
          %152 = vsyncadd [#allocation5], %s151
          %s154 = sshll.u32 %s2, 4
          %s155 = int_to_ptr.vmem [resolvable:$true] %s154
          %157 = dma.vmem_to_smem %s155, 16, [#allocation4], [#allocation5]
        $region20: #{downsample_forward.1} parent=11 // pred_fallthru
          _
      $region12: #{downsample_forward.1} parent=5 // pred_fallthru
        _
      %p158 = scmp.lt.s32.totalorder %s11, 2
      // Predicated region
      $region21: #{downsample_forward.1} parent=5 // pred_check
        %p159 = pneg %p158
      $region22: #{downsample_forward.1} parent=5 // pred_check_branch
        %161 = sbr.rel (%p159) target = $region24
      $region23: #{downsample_forward.1} parent=5 // pred_region
        // Predicated region
        $region25: #{downsample_forward.1} parent=23 // pred_check
          %p162 = pneg %p45
        $region26: #{downsample_forward.1} parent=23 // pred_check_branch
          %164 = sbr.rel (%p162) target = $region28
        $region27: #{downsample_forward.1} parent=23 // pred_region
          %s165 = smul.u32 2, %s19
          %p166 = scmp.lt.s32.totalorder %s18, 1
          %s167 = scalar_select %p166, %s18, 1
          %p168 = scmp.lt.s32.totalorder %s165, 1
          %s169 = scalar_select %p168, %s165, 1
          %s170 = smul.addr %s167, 18
          %s171 = sadd.s32 %s169, %s170
          %s172 = smul.addr %s171, 8
          %s173 = scalar_lea.vmem %s0, %s172
          %s174 = smul.u32 2, %s19
        $region28: #{downsample_forward.1} parent=23 // pred_fallthru
          _
      $region24: #{downsample_forward.1} parent=5 // pred_fallthru
        _
      %p175 = scmp.le.s32.totalorder 1, %s11
      %p176 = scmp.lt.s32.totalorder %s11, 3
      %p177 = pnand %p175, %p176
      %p178 = pneg %p177
      // Predicated region
      $region29: #{downsample_forward.1} parent=5 // pred_check
        _
      $region30: #{downsample_forward.1} parent=5 // pred_check_branch
        %180 = sbr.rel (%p177) target = $region32
      $region31: #{downsample_forward.1} parent=5 // pred_region
        %s181 = ssub.s32 %s11, 1
        // Predicated region
        $region33: #{downsample_forward.1} parent=31 // pred_check
          %p182 = pneg %p72
        $region34: #{downsample_forward.1} parent=31 // pred_check_branch
          %184 = sbr.rel (%p182) target = $region36
        $region35: #{downsample_forward.1} parent=31 // pred_region
          %185 = dma.done [#allocation3], 16
        $region36: #{downsample_forward.1} parent=31 // pred_fallthru
          _
        // Predicated region
        $region37: #{downsample_forward.1} parent=31 // pred_check
          %p186 = pneg %p93
        $region38: #{downsample_forward.1} parent=31 // pred_check_branch
          %188 = sbr.rel (%p186) target = $region40
        $region39: #{downsample_forward.1} parent=31 // pred_region
          %189 = dma.done [#allocation5], 16
        $region40: #{downsample_forward.1} parent=31 // pred_fallthru
          _
        %190 = sfence
        %s191 = smul.u32 2, %s21
        %p192 = scmp.lt.s32.totalorder %s20, 1
        %s193 = scalar_select %p192, %s20, 1
        %p194 = scmp.lt.s32.totalorder %s191, 1
        %s195 = scalar_select %p194, %s191, 1
        %s196 = smul.addr %s193, 18
        %s197 = sadd.s32 %s195, %s196
        %s198 = smul.addr %s197, 8
        %s199 = scalar_lea.vmem %s0, %s198
        %p200 = pneg %p51
        %p201 = pneg %p48
        %p202 = pneg %p72
        %p203 = pneg %p69
        %p204 = pneg %p93
        %p205 = pneg %p90
        %p206 = pneg %p121
        %p207 = pneg %p118
        %s208 = smul.u32 2, %s21
        %p209 = scmp.lt.s32.totalorder %s20, 1
        %s210 = scalar_select %p209, %s20, 1
        %p211 = scmp.lt.s32.totalorder %s208, 1
        %s212 = scalar_select %p211, %s208, 1
        %s213 = smul.addr %s210, 6
        %s214 = sadd.s32 %s212, %s213
        %s215 = smul.addr %s214, 8
        %s216 = scalar_lea.vmem %s3, %s215
        %s217 = smul.u32 2, %s21
        %p218 = scmp.lt.s32.totalorder %s20, 1
        %s219 = scalar_select %p218, %s20, 1
        %p220 = scmp.lt.s32.totalorder %s217, 1
        %s221 = scalar_select %p220, %s217, 1
        %s222 = smul.addr %s219, 18
        %s223 = sadd.s32 %s221, %s222
        %s224 = smul.addr %s223, 8
        %s225 = scalar_lea.vmem %s0, %s224
        %s226 = smul.u32 2, %s21
        %s227 = smul.u32 2, %s21
        %p228 = scmp.lt.s32.totalorder %s20, 1
        %s229 = scalar_select %p228, %s20, 1
        %p230 = scmp.lt.s32.totalorder %s227, 1
        %s231 = scalar_select %p230, %s227, 1
        %s232 = smul.addr %s229, 6
        %s233 = sadd.s32 %s231, %s232
        %s234 = smul.addr %s233, 8
        %s235 = scalar_lea.vmem %s3, %s234
        %s236 = smul.u32 2, %s21
        %s237 = sld [smem:[#allocation2]]
        %s238 = sld [smem:[#allocation2 + $0x1]]
        %s239 = sld [smem:[#allocation2 + $0x2]]
        %s240 = sld [smem:[#allocation2 + $0x3]]
        %s241 = sld [smem:[#allocation2 + $0x4]]
        %s242 = sld [smem:[#allocation2 + $0x5]]
        %s243 = sld [smem:[#allocation2 + $0x6]]
        %s244 = sld [smem:[#allocation2 + $0x7]]
        %s245 = sld [smem:[#allocation2 + $0x8]]
        %s246 = sld [smem:[#allocation2 + $0x9]]
        %s247 = sld [smem:[#allocation2 + $0xa]]
        %s248 = sld [smem:[#allocation2 + $0xb]]
        %s249 = sld [smem:[#allocation2 + $0xc]]
        %s250 = sld [smem:[#allocation2 + $0xd]]
        %s251 = sld [smem:[#allocation2 + $0xe]]
        %s252 = sld [smem:[#allocation2 + $0xf]]
        %s253 = sld [smem:[#allocation2 + $0x10]]
        %s254 = sld [smem:[#allocation2 + $0x11]]
        %s255 = sld [smem:[#allocation2 + $0x12]]
        %s256 = sld [smem:[#allocation2 + $0x13]]
        %s257 = sld [smem:[#allocation2 + $0x14]]
        %s258 = sld [smem:[#allocation2 + $0x15]]
        %s259 = sld [smem:[#allocation2 + $0x16]]
        %s260 = sld [smem:[#allocation2 + $0x17]]
        %s261 = sld [smem:[#allocation2 + $0x18]]
        %s262 = sld [smem:[#allocation2 + $0x19]]
        %s263 = sld [smem:[#allocation2 + $0x1a]]
        %s264 = sld [smem:[#allocation4]]
        %s265 = sld [smem:[#allocation4 + $0x1]]
        %s266 = sld [smem:[#allocation4 + $0x2]]
        %v267 = vld [vmem:[%s225] sm:$0xff]
        %v268 = vld [vmem:[%s225 + $0x8] sm:$0xff]
        %s269 = sadd.s32 0, 16
        %s270 = scalar_lea.vmem %s225, %s269
        %v271 = vld [vmem:[%s270] sm:$0xff]
        %v272 = vld [vmem:[%s270 + $0x8] sm:$0xff]
        %s273 = sadd.s32 0, 32
        %s274 = scalar_lea.vmem %s225, %s273
        %v275 = vld [vmem:[%s274] sm:$0xff]
        %v276 = vld [vmem:[%s274 + $0x8] sm:$0xff]
        %s277 = sadd.s32 0, 48
        %s278 = scalar_lea.vmem %s225, %s277
        %v279 = vld [vmem:[%s278] sm:$0xff]
        %v280 = vld [vmem:[%s278 + $0x8] sm:$0xff]
        %s281 = sadd.s32 0, 64
        %s282 = scalar_lea.vmem %s225, %s281
        %v283 = vld [vmem:[%s282] sm:$0xff]
        %v284 = vld [vmem:[%s282 + $0x8] sm:$0xff]
        %s285 = sadd.s32 0, 80
        %s286 = scalar_lea.vmem %s225, %s285
        %v287 = vld [vmem:[%s286] sm:$0xff]
        %v288 = vld [vmem:[%s286 + $0x8] sm:$0xff]
        %s289 = sadd.s32 0, 96
        %s290 = scalar_lea.vmem %s225, %s289
        %v291 = vld [vmem:[%s290] sm:$0xff]
        %v292 = vld [vmem:[%s290 + $0x8] sm:$0xff]
        %s293 = sadd.s32 0, 112
        %s294 = scalar_lea.vmem %s225, %s293
        %v295 = vld [vmem:[%s294] sm:$0xff]
        %v296 = vld [vmem:[%s294 + $0x8] sm:$0xff]
        %s297 = sadd.s32 0, 128
        %s298 = scalar_lea.vmem %s225, %s297
        %v299 = vld [vmem:[%s298] sm:$0xff]
        %v300 = vld [vmem:[%s298 + $0x8] sm:$0xff]
        %v301 = vstv %s237
        %v302 = vmul.f32 %v267, %v301
        %v303 = vmul.f32 %v268, %v301
        %v304 = vstv %s238
        %v305 = vmul.f32 %v271, %v304
        %v306 = vmul.f32 %v272, %v304
        %v307 = vadd.f32 %v302, %v305
        %v308 = vadd.f32 %v303, %v306
        %v309 = vstv %s239
        %v310 = vmul.f32 %v275, %v309
        %v311 = vmul.f32 %v276, %v309
        %v312 = vadd.f32 %v307, %v310
        %v313 = vadd.f32 %v308, %v311
        %v314 = vstv %s240
        %v315 = vmul.f32 %v279, %v314
        %v316 = vmul.f32 %v280, %v314
        %v317 = vadd.f32 %v312, %v315
        %v318 = vadd.f32 %v313, %v316
        %v319 = vstv %s241
        %v320 = vmul.f32 %v283, %v319
        %v321 = vmul.f32 %v284, %v319
        %v322 = vadd.f32 %v317, %v320
        %v323 = vadd.f32 %v318, %v321
        %v324 = vstv %s242
        %v325 = vmul.f32 %v287, %v324
        %v326 = vmul.f32 %v288, %v324
        %v327 = vadd.f32 %v322, %v325
        %v328 = vadd.f32 %v323, %v326
        %v329 = vstv %s243
        %v330 = vmul.f32 %v291, %v329
        %v331 = vmul.f32 %v292, %v329
        %v332 = vadd.f32 %v327, %v330
        %v333 = vadd.f32 %v328, %v331
        %v334 = vstv %s244
        %v335 = vmul.f32 %v295, %v334
        %v336 = vmul.f32 %v296, %v334
        %v337 = vadd.f32 %v332, %v335
        %v338 = vadd.f32 %v333, %v336
        %v339 = vstv %s245
        %v340 = vmul.f32 %v299, %v339
        %v341 = vmul.f32 %v300, %v339
        %v342 = vadd.f32 %v337, %v340
        %v343 = vadd.f32 %v338, %v341
        %v344 = vstv %s264
        %v345 = vadd.f32 %v342, %v344
        %v346 = vadd.f32 %v343, %v344
        %347 = vst [vmem:[%s235] sm:$0xff] %v345
        %348 = vst [vmem:[%s235 + $0x8] sm:$0xff] %v346
        %v349 = vstv %s246
        %v350 = vmul.f32 %v267, %v349
        %v351 = vmul.f32 %v268, %v349
        %v352 = vstv %s247
        %v353 = vmul.f32 %v271, %v352
        %v354 = vmul.f32 %v272, %v352
        %v355 = vadd.f32 %v350, %v353
        %v356 = vadd.f32 %v351, %v354
        %v357 = vstv %s248
        %v358 = vmul.f32 %v275, %v357
        %v359 = vmul.f32 %v276, %v357
        %v360 = vadd.f32 %v355, %v358
        %v361 = vadd.f32 %v356, %v359
        %v362 = vstv %s249
        %v363 = vmul.f32 %v279, %v362
        %v364 = vmul.f32 %v280, %v362
        %v365 = vadd.f32 %v360, %v363
        %v366 = vadd.f32 %v361, %v364
        %v367 = vstv %s250
        %v368 = vmul.f32 %v283, %v367
        %v369 = vmul.f32 %v284, %v367
        %v370 = vadd.f32 %v365, %v368
        %v371 = vadd.f32 %v366, %v369
        %v372 = vstv %s251
        %v373 = vmul.f32 %v287, %v372
        %v374 = vmul.f32 %v288, %v372
        %v375 = vadd.f32 %v370, %v373
        %v376 = vadd.f32 %v371, %v374
        %v377 = vstv %s252
        %v378 = vmul.f32 %v291, %v377
        %v379 = vmul.f32 %v292, %v377
        %v380 = vadd.f32 %v375, %v378
        %v381 = vadd.f32 %v376, %v379
        %v382 = vstv %s253
        %v383 = vmul.f32 %v295, %v382
        %v384 = vmul.f32 %v296, %v382
        %v385 = vadd.f32 %v380, %v383
        %v386 = vadd.f32 %v381, %v384
        %v387 = vstv %s254
        %v388 = vmul.f32 %v299, %v387
        %v389 = vmul.f32 %v300, %v387
        %v390 = vadd.f32 %v385, %v388
        %v391 = vadd.f32 %v386, %v389
        %v392 = vstv %s265
        %v393 = vadd.f32 %v390, %v392
        %v394 = vadd.f32 %v391, %v392
        %s395 = scalar_lea.vmem %s235, %s269
        %396 = vst [vmem:[%s395] sm:$0xff] %v393
        %397 = vst [vmem:[%s395 + $0x8] sm:$0xff] %v394
        %v398 = vstv %s255
        %v399 = vmul.f32 %v267, %v398
        %v400 = vmul.f32 %v268, %v398
        %v401 = vstv %s256
        %v402 = vmul.f32 %v271, %v401
        %v403 = vmul.f32 %v272, %v401
        %v404 = vadd.f32 %v399, %v402
        %v405 = vadd.f32 %v400, %v403
        %v406 = vstv %s257
        %v407 = vmul.f32 %v275, %v406
        %v408 = vmul.f32 %v276, %v406
        %v409 = vadd.f32 %v404, %v407
        %v410 = vadd.f32 %v405, %v408
        %v411 = vstv %s258
        %v412 = vmul.f32 %v279, %v411
        %v413 = vmul.f32 %v280, %v411
        %v414 = vadd.f32 %v409, %v412
        %v415 = vadd.f32 %v410, %v413
        %v416 = vstv %s259
        %v417 = vmul.f32 %v283, %v416
        %v418 = vmul.f32 %v284, %v416
        %v419 = vadd.f32 %v414, %v417
        %v420 = vadd.f32 %v415, %v418
        %v421 = vstv %s260
        %v422 = vmul.f32 %v287, %v421
        %v423 = vmul.f32 %v288, %v421
        %v424 = vadd.f32 %v419, %v422
        %v425 = vadd.f32 %v420, %v423
        %v426 = vstv %s261
        %v427 = vmul.f32 %v291, %v426
        %v428 = vmul.f32 %v292, %v426
        %v429 = vadd.f32 %v424, %v427
        %v430 = vadd.f32 %v425, %v428
        %v431 = vstv %s262
        %v432 = vmul.f32 %v295, %v431
        %v433 = vmul.f32 %v296, %v431
        %v434 = vadd.f32 %v429, %v432
        %v435 = vadd.f32 %v430, %v433
        %v436 = vstv %s263
        %v437 = vmul.f32 %v299, %v436
        %v438 = vmul.f32 %v300, %v436
        %v439 = vadd.f32 %v434, %v437
        %v440 = vadd.f32 %v435, %v438
        %v441 = vstv %s266
        %v442 = vadd.f32 %v439, %v441
        %v443 = vadd.f32 %v440, %v441
        %s444 = scalar_lea.vmem %s235, %s273
        %445 = vst [vmem:[%s444] sm:$0xff] %v442
        %446 = vst [vmem:[%s444 + $0x8] sm:$0xff] %v443
        %s447 = smul.u32 2, %s21
        %p448 = scmp.lt.s32.totalorder %s20, 1
        %s449 = scalar_select %p448, %s20, 1
        %p450 = scmp.lt.s32.totalorder %s447, 1
        %s451 = scalar_select %p450, %s447, 1
        %s452 = smul.addr %s449, 6
        %s453 = sadd.s32 %s451, %s452
        %s454 = smul.addr %s453, 8
        %s455 = scalar_lea.vmem %s3, %s454
        // Predicated region
        $region41: #{downsample_forward.1} parent=31 // pred_check
          %p456 = pneg %p118
        $region42: #{downsample_forward.1} parent=31 // pred_check_branch
          %458 = sbr.rel (%p456) target = $region44
        $region43: #{downsample_forward.1} parent=31 // pred_region
          %s459 = smul.u32 2, %s21
        $region44: #{downsample_forward.1} parent=31 // pred_fallthru
          _
      $region32: #{downsample_forward.1} parent=5 // pred_fallthru
        _
      %p460 = scmp.le.s32.totalorder 2, %s11
      // Predicated region
      $region45: #{downsample_forward.1} parent=5 // pred_check
        %p461 = pneg %p460
      $region46: #{downsample_forward.1} parent=5 // pred_check_branch
        %463 = sbr.rel (%p461) target = $region48
      $region47: #{downsample_forward.1} parent=5 // pred_region
        %s464 = ssub.s32 %s11, 2
        // Predicated region
        $region49: #{downsample_forward.1} parent=47 // pred_check
          %p465 = pneg %p124
        $region50: #{downsample_forward.1} parent=47 // pred_check_branch
          %467 = sbr.rel (%p465) target = $region52
        $region51: #{downsample_forward.1} parent=47 // pred_region
          %s468 = smul.u32 2, %s23
          %p469 = scmp.lt.s32.totalorder %s22, 1
          %s470 = scalar_select %p469, %s22, 1
          %p471 = scmp.lt.s32.totalorder %s468, 1
          %s472 = scalar_select %p471, %s468, 1
          %s473 = smul.addr %s470, 6
          %s474 = sadd.s32 %s472, %s473
          %s475 = smul.addr %s474, 8
          %s476 = scalar_lea.vmem %s3, %s475
        $region52: #{downsample_forward.1} parent=47 // pred_fallthru
          _
      $region48: #{downsample_forward.1} parent=5 // pred_fallthru
        _
    $region6: #{downsample_forward.1} parent=1 // loop_footer
      %s15 = sadd.s32 1, %s11
    $region7: #{downsample_forward.1} parent=1 // loop_footer_branch
      %10 = sbr.rel target = $region3
    $region8: #{downsample_forward.1} parent=1 // loop_exit
      _
    %477 = vsyncpa [#allocation3], 1
    %s478 = scalar_lea.sflag [#allocation3], 1
    %479 = vsyncpa %s478, 1
    %480 = vsyncpa [#allocation5], 1

</llo_original>
